<compile_context>
chip_gen: v5e
topology: v5e:2x2
jax: 0.10.0
libtpu: 0.0.40
codegen_flags: <defaults>
</compile_context>

<pallas_src>
import jax
import jax.numpy as jnp
from jax.experimental import pallas as pl
from jax.experimental.pallas import tpu as pltpu


# ----------------------------- Pallas kernel ------------------------------- #

def _channel_gate_kernel(x_ref, w1_ref, b1_ref, w2_ref, b2_ref, o_ref):
    """Fused global-pool + MLP + sigmoid for one batch element.

    x_ref:  (HW, C)   channels-last pixels of one image
    w1_ref: (C, Ch)   first Linear weight (already transposed to in x out)
    b1_ref: (1, Ch)   first Linear bias
    w2_ref: (Ch, C)   second Linear weight (in x out)
    b2_ref: (1, C)    second Linear bias
    o_ref:  (1, C)    channel attention scale (post-sigmoid)
    """
    x = x_ref[...].astype(jnp.float32)                       # (HW, C)
    hw = x.shape[0]

    # Global pooling over all pixels (sublane-axis reduction -> XLU, not VALU-bound).
    avg = jnp.sum(x, axis=0, keepdims=True) * (1.0 / hw)     # (1, C)
    mx = jnp.max(x, axis=0, keepdims=True)                   # (1, C)

    # Stack the two pooled vectors so the shared MLP runs as one matmul per layer (MXU).
    pooled = jnp.concatenate([avg, mx], axis=0)              # (2, C)

    h = jnp.dot(pooled, w1_ref[...].astype(jnp.float32),
                preferred_element_type=jnp.float32)
    h = jnp.maximum(h + b1_ref[...].astype(jnp.float32), 0.0)         # (2, Ch)

    att = jnp.dot(h, w2_ref[...].astype(jnp.float32),
                  preferred_element_type=jnp.float32)
    att = att + b2_ref[...].astype(jnp.float32)                        # (2, C)

    att_sum = att[0:1, :] + att[1:2, :]                                # (1, C)
    scale = 1.0 / (1.0 + jnp.exp(-att_sum))                            # sigmoid (EUP exp)
    o_ref[...] = scale.astype(o_ref.dtype)


# ------------------------------ wrapper (glue) ------------------------------ #

def channel_gate_forward(x, params):
    """x: (B, C, H, W) PyTorch layout. Returns scale of shape (B, C, 1, 1)."""
    B, C, H, W = x.shape
    hw = H * W
    Ch = params["w1"].shape[1]
    dtype = x.dtype

    # channels-last pixel layout for the kernel
    x_cl = jnp.transpose(x.reshape(B, C, hw), (0, 2, 1))     # (B, HW, C)

    out = pl.pallas_call(
        _channel_gate_kernel,
        out_shape=jax.ShapeDtypeStruct((B, 1, C), dtype),
        grid=(B,),
        in_specs=[
            pl.BlockSpec((None, hw, C), lambda i: (i, 0, 0)),   # per-batch pixel tile
            pl.BlockSpec((C, Ch), lambda i: (0, 0)),
            pl.BlockSpec((1, Ch), lambda i: (0, 0)),
            pl.BlockSpec((Ch, C), lambda i: (0, 0)),
            pl.BlockSpec((1, C), lambda i: (0, 0)),
        ],
        out_specs=pl.BlockSpec((None, 1, C), lambda i: (i, 0, 0)),
        compiler_params=pltpu.CompilerParams(dimension_semantics=("parallel",)),
    )(x_cl, params["w1"], params["b1"], params["w2"], params["b2"])

    # (B, 1, C) -> (B, C, 1, 1)   (== torch.sigmoid(att).unsqueeze(2).unsqueeze(3))
    return out.reshape(B, C)[:, :, None, None]


# --------------------------- parameter construction ------------------------- #

def init_params(key, gate_channels, reduction_ratio=16, dtype=jnp.float32):
    hidden = gate_channels // reduction_ratio
    assert hidden >= 1, "gate_channels must be >= reduction_ratio"
    k1, k2, k3, k4 = jax.random.split(key, 4)
    # Stored directly as (in, out) so the kernel needs no transposes / strided reads.
    params = {
        "w1": 0.2 * jax.random.normal(k1, (gate_channels, hidden), dtype),
        "b1": 0.1 * jax.random.normal(k2, (1, hidden), dtype),
        "w2": 0.2 * jax.random.normal(k3, (hidden, gate_channels), dtype),
        "b2": 0.1 * jax.random.normal(k4, (1, gate_channels), dtype),
    }
    return params


# ------------------------------ pure-JAX reference -------------------------- #

def reference_forward(x, params):
    B, C, H, W = x.shape
    avg = jnp.mean(x, axis=(2, 3))                                  # (B, C)
    mx = jnp.max(x, axis=(2, 3))                                    # (B, C)

    def mlp(p):
        h = jnp.maximum(p @ params["w1"] + params["b1"], 0.0)
        return h @ params["w2"] + params["b2"]

    att = mlp(avg) + mlp(mx)
    scale = 1.0 / (1.0 + jnp.exp(-att))
    return scale[:, :, None, None]


# ------------------------------------ main ---------------------------------- #

if __name__ == "__main__":
    key = jax.random.PRNGKey(0)
    kx, kp = jax.random.split(key)

    B, gate_channels, H, W = 2, 32, 16, 16
    reduction_ratio = 16

    x = jax.random.normal(kx, (B, gate_channels, H, W), jnp.float32)
    params = init_params(kp, gate_channels, reduction_ratio)

    out = channel_gate_forward(x, params)
    out = jax.block_until_ready(out)

    assert out.shape == (B, gate_channels, 1, 1), out.shape

    ref = reference_forward(x, params)
    if not jnp.allclose(out, ref, rtol=1e-5, atol=1e-5):
        raise AssertionError(
            f"mismatch vs reference: max abs err = {float(jnp.max(jnp.abs(out - ref)))}")

    print("KERNEL_OK")
</pallas_src>

<mosaic_0001>
module attributes {stable_mosaic.version = 11 : i64} {
  func.func @_channel_gate_kernel(%arg0: i32, %arg1: memref<1x256x32xf32, #tpu.memory_space<vmem>>, %arg2: memref<32x2xf32, #tpu.memory_space<vmem>>, %arg3: memref<1x2xf32, #tpu.memory_space<vmem>>, %arg4: memref<2x32xf32, #tpu.memory_space<vmem>>, %arg5: memref<1x32xf32, #tpu.memory_space<vmem>>, %arg6: memref<1x1x32xf32, #tpu.memory_space<vmem>>) attributes {dimension_semantics = [#tpu.dimension_semantics<parallel>], iteration_bounds = array<i64: 2>, scalar_prefetch = 0 : i64, scratch_operands = 0 : i64, tpu.core_type = #tpu.core_type<tc>, window_params = [{transform_indices = @transform_0, window_bounds = array<i64: 1, 256, 32>}, {pipeline_mode = #tpu.pipeline_mode<synchronous>, transform_indices = @transform_1, window_bounds = array<i64: 32, 2>}, {pipeline_mode = #tpu.pipeline_mode<synchronous>, transform_indices = @transform_2, window_bounds = array<i64: 1, 2>}, {pipeline_mode = #tpu.pipeline_mode<synchronous>, transform_indices = @transform_3, window_bounds = array<i64: 2, 32>}, {pipeline_mode = #tpu.pipeline_mode<synchronous>, transform_indices = @transform_4, window_bounds = array<i64: 1, 32>}, {transform_indices = @transform_5, window_bounds = array<i64: 1, 1, 32>}]} {
    %c0 = arith.constant 0 : index
    %c0_0 = arith.constant 0 : index
    %c0_1 = arith.constant 0 : index
    %0 = vector.load %arg1[%c0, %c0_0, %c0_1] : memref<1x256x32xf32, #tpu.memory_space<vmem>>, vector<1x256x32xf32>
    %1 = vector.shape_cast %0 : vector<1x256x32xf32> to vector<256x32xf32>
    %cst = arith.constant dense<0.000000e+00> : vector<32xf32>
    %2 = vector.multi_reduction <add>, %1, %cst [0] : vector<256x32xf32> to vector<32xf32>
    %3 = vector.shape_cast %2 : vector<32xf32> to vector<1x32xf32>
    %cst_2 = arith.constant 3.906250e-03 : f32
    %4 = vector.broadcast %cst_2 : f32 to vector<1x32xf32>
    %5 = arith.mulf %3, %4 : vector<1x32xf32>
    %cst_3 = arith.constant dense<0xFF800000> : vector<32xf32>
    %6 = vector.multi_reduction <maximumf>, %1, %cst_3 [0] : vector<256x32xf32> to vector<32xf32>
    %7 = vector.shape_cast %6 : vector<32xf32> to vector<1x32xf32>
    %8 = tpu.concatenate %5, %7 in 0 : vector<1x32xf32>, vector<1x32xf32> -> vector<2x32xf32>
    %c0_4 = arith.constant 0 : index
    %c0_5 = arith.constant 0 : index
    %9 = vector.load %arg2[%c0_4, %c0_5] : memref<32x2xf32, #tpu.memory_space<vmem>>, vector<32x2xf32>
    %cst_6 = arith.constant dense<0.000000e+00> : vector<2x2xf32>
    %10 = tpu.matmul %8, %9, %cst_6 {dimension_numbers = #tpu.dot_dimension_numbers<[1], [0], [0], [1], [0, 0, 1, 1], [], []>} : vector<2x32xf32>, vector<32x2xf32>, vector<2x2xf32> -> vector<2x2xf32>
    %c0_7 = arith.constant 0 : index
    %c0_8 = arith.constant 0 : index
    %11 = vector.load %arg3[%c0_7, %c0_8] : memref<1x2xf32, #tpu.memory_space<vmem>>, vector<1x2xf32>
    %12 = vector.broadcast %11 : vector<1x2xf32> to vector<2x2xf32>
    %13 = arith.addf %10, %12 : vector<2x2xf32>
    %cst_9 = arith.constant 0.000000e+00 : f32
    %14 = vector.broadcast %cst_9 : f32 to vector<2x2xf32>
    %15 = arith.maximumf %13, %14 : vector<2x2xf32>
    %c0_10 = arith.constant 0 : index
    %c0_11 = arith.constant 0 : index
    %16 = vector.load %arg4[%c0_10, %c0_11] : memref<2x32xf32, #tpu.memory_space<vmem>>, vector<2x32xf32>
    %cst_12 = arith.constant dense<0.000000e+00> : vector<2x32xf32>
    %17 = tpu.matmul %15, %16, %cst_12 {dimension_numbers = #tpu.dot_dimension_numbers<[1], [0], [0], [1], [0, 0, 1, 1], [], []>} : vector<2x2xf32>, vector<2x32xf32>, vector<2x32xf32> -> vector<2x32xf32>
    %c0_13 = arith.constant 0 : index
    %c0_14 = arith.constant 0 : index
    %18 = vector.load %arg5[%c0_13, %c0_14] : memref<1x32xf32, #tpu.memory_space<vmem>>, vector<1x32xf32>
    %19 = vector.broadcast %18 : vector<1x32xf32> to vector<2x32xf32>
    %20 = arith.addf %17, %19 : vector<2x32xf32>
    %21 = vector.extract_strided_slice %20 {offsets = [0, 0], sizes = [1, 32], strides = [1, 1]} : vector<2x32xf32> to vector<1x32xf32>
    %22 = vector.extract_strided_slice %20 {offsets = [1, 0], sizes = [1, 32], strides = [1, 1]} : vector<2x32xf32> to vector<1x32xf32>
    %23 = arith.addf %21, %22 : vector<1x32xf32>
    %cst_15 = arith.constant 0.000000e+00 : f32
    %24 = vector.broadcast %cst_15 : f32 to vector<1x32xf32>
    %25 = arith.subf %24, %23 : vector<1x32xf32>
    %26 = math.exp %25 : vector<1x32xf32>
    %cst_16 = arith.constant 1.000000e+00 : f32
    %27 = vector.broadcast %cst_16 : f32 to vector<1x32xf32>
    %28 = arith.addf %27, %26 : vector<1x32xf32>
    %cst_17 = arith.constant 1.000000e+00 : f32
    %29 = vector.broadcast %cst_17 : f32 to vector<1x32xf32>
    %30 = arith.divf %29, %28 : vector<1x32xf32>
    %c0_18 = arith.constant 0 : index
    %c0_19 = arith.constant 0 : index
    %c0_20 = arith.constant 0 : index
    %31 = vector.load %arg6[%c0_18, %c0_19, %c0_20] : memref<1x1x32xf32, #tpu.memory_space<vmem>>, vector<1x1x32xf32>
    %32 = vector.shape_cast %31 : vector<1x1x32xf32> to vector<1x32xf32>
    %33 = vector.shape_cast %30 : vector<1x32xf32> to vector<1x1x32xf32>
    tpu.vector_store %arg6[%c0_18, %c0_19, %c0_20], %33 {strides = array<i32>} : memref<1x1x32xf32, #tpu.memory_space<vmem>>, vector<1x1x32xf32>,
    return
  }
  func.func @transform_0(%arg0: i32) -> (i32, i32, i32) {
    %c0_i32 = arith.constant 0 : i32
    %c0_i32_0 = arith.constant 0 : i32
    %c0_i32_1 = arith.constant 0 : i32
    return %arg0, %c0_i32, %c0_i32_0 : i32, i32, i32
  }
  func.func @transform_1(%arg0: i32) -> (i32, i32) {
    %c0_i32 = arith.constant 0 : i32
    %c0_i32_0 = arith.constant 0 : i32
    %c0_i32_1 = arith.constant 0 : i32
    return %c0_i32, %c0_i32_0 : i32, i32
  }
  func.func @transform_2(%arg0: i32) -> (i32, i32) {
    %c0_i32 = arith.constant 0 : i32
    %c0_i32_0 = arith.constant 0 : i32
    %c0_i32_1 = arith.constant 0 : i32
    return %c0_i32, %c0_i32_0 : i32, i32
  }
  func.func @transform_3(%arg0: i32) -> (i32, i32) {
    %c0_i32 = arith.constant 0 : i32
    %c0_i32_0 = arith.constant 0 : i32
    %c0_i32_1 = arith.constant 0 : i32
    return %c0_i32, %c0_i32_0 : i32, i32
  }
  func.func @transform_4(%arg0: i32) -> (i32, i32) {
    %c0_i32 = arith.constant 0 : i32
    %c0_i32_0 = arith.constant 0 : i32
    %c0_i32_1 = arith.constant 0 : i32
    return %c0_i32, %c0_i32_0 : i32, i32
  }
  func.func @transform_5(%arg0: i32) -> (i32, i32, i32) {
    %c0_i32 = arith.constant 0 : i32
    %c0_i32_0 = arith.constant 0 : i32
    %c0_i32_1 = arith.constant 0 : i32
    return %arg0, %c0_i32, %c0_i32_0 : i32, i32, i32
  }
}

</mosaic_0001>

<llo_original>
// kernel: tpu_custom_call.1
$region0: #{tpu_custom_call.1}
  #allocation0 [shape = 'u32[]', space=smem, size = 0x4, offset = 0x4, fixed_abs, tag = 'smem constant byte address 0x4 - core index']
  #allocation1 [shape = 'u32[72,128]{1,0:T(1,128)}', space=vmem, size = 0x9000, scoped, tag = 'internal scratch']
  %s0 = inlined_call_operand.vmem [shape: f32[2,256,32], index: 0, kind: input, shape index: {}]
  %s1 = inlined_call_operand.vmem [shape: f32[32,2], index: 1, kind: input, shape index: {}]
  %s2 = inlined_call_operand.vmem [shape: f32[1,2], index: 2, kind: input, shape index: {}]
  %s3 = inlined_call_operand.vmem [shape: f32[2,32], index: 3, kind: input, shape index: {}]
  %s4 = inlined_call_operand.vmem [shape: f32[1,32], index: 4, kind: input, shape index: {}]
  %s5 = inlined_call_operand.hbm [shape: f32[2,1,32], index: 5, kind: output, shape index: {}]
  %s6 = sld [smem:[#allocation0]]
  $region53: #{tpu_custom_call.1} parent=0
    _
  %s8 = ssub.s32 1, %s6
  %s9 = scalar_select 0, %s8, %s6
  $region1: #{tpu_custom_call.1} parent=0
    #allocation2 [shape = 'u8[1024]{0}', space=vmem, size = 0x400, scoped, tag = 'output window, operand 0']
    #allocation3 [shape = 's32[2]{0}', space=sflag, size = 0x8, scoped, tag = 'scoped memory for tpu_custom_call.1']
    %10 = vsyncpa [#allocation3], 0
    %s11 = scalar_lea.sflag [#allocation3], 1
    %12 = vsyncpa %s11, 0
    loop: start=0, step=1, limit=4
    $region2: #{tpu_custom_call.1} parent=1 // loop_pre_header
      _
    $region3: #{tpu_custom_call.1} parent=1 // loop_header
      %s14 = sphi 0, %s18
      %p15 = scmp.ge.s32.totalorder %s14, 4
      %s24 = sphi 0, %s26
      %s27 = sphi 0, %s24
      %s28 = sphi 0, %s27
      %s44 = sphi 0, %s28
      %s48 = sphi 0, %s48
      %s50 = sphi 0, %s48
      %s51 = sphi 0, %s50
      %s65 = sphi 0, %s51
      %s69 = sphi 0, %s69
      %s71 = sphi 0, %s69
      %s72 = sphi 0, %s71
      %s86 = sphi 0, %s72
      %s90 = sphi 0, %s90
      %s92 = sphi 0, %s90
      %s93 = sphi 0, %s92
      %s107 = sphi 0, %s93
      %s111 = sphi 0, %s111
      %s113 = sphi 0, %s111
      %s114 = sphi 0, %s113
      %s128 = sphi 0, %s114
      %s134 = sphi 0, %s136
      %s137 = sphi 0, %s134
      %s138 = sphi 0, %s137
      %s154 = sphi 0, %s138
    $region4: #{tpu_custom_call.1} parent=1 // loop_header_branch
      %17 = sbr.rel (%p15) target = $region8
    $region5: #{tpu_custom_call.1} parent=1 // loop_body
      %s19 = ssub.s32 %s14, 1
      %s20 = ssub.s32 %s14, 2
      %s21 = sadd.s32 %s14, 1
      %s22 = ssub.s32 %s14, %s21
      %p23 = scmp.eq.s32.totalorder %s22, 0
      %s25 = sadd.s32 %s24, 1
      %s26 = scalar_select %p23, %s24, %s25
      %p29 = pneg %p23
      %p30 = scmp.eq.s32.totalorder %s14, 1
      %p31 = por %p29, %p30
      %p32 = scmp.ne.s32.totalorder %s24, %s27
      %p33 = scmp.eq.s32.totalorder %s14, 0
      %p34 = por %p32, %p33
      %p35 = scmp.ne.s32.totalorder %s24, %s27
      %p36 = scmp.eq.s32.totalorder %s19, 1
      %p37 = por %p35, %p36
      %p38 = scmp.ne.s32.totalorder %s27, %s28
      %p39 = scmp.eq.s32.totalorder %s19, 0
      %p40 = por %p38, %p39
      %p41 = scmp.ne.s32.totalorder %s27, %s28
      %p42 = scmp.eq.s32.totalorder %s20, 1
      %p43 = por %p41, %p42
      %p45 = scmp.ne.s32.totalorder %s28, %s44
      %p46 = scmp.eq.s32.totalorder %s20, 0
      %p47 = por %p45, %p46
      %s49 = sadd.s32 %s48, 1
      %p52 = scmp.eq.s32.totalorder %s14, 1
      %p53 = scmp.ne.s32.totalorder %s48, %s50
      %p54 = scmp.eq.s32.totalorder %s14, 0
      %p55 = por %p53, %p54
      %p56 = scmp.ne.s32.totalorder %s48, %s50
      %p57 = scmp.eq.s32.totalorder %s19, 1
      %p58 = por %p56, %p57
      %p59 = scmp.ne.s32.totalorder %s50, %s51
      %p60 = scmp.eq.s32.totalorder %s19, 0
      %p61 = por %p59, %p60
      %p62 = scmp.ne.s32.totalorder %s50, %s51
      %p63 = scmp.eq.s32.totalorder %s20, 1
      %p64 = por %p62, %p63
      %p66 = scmp.ne.s32.totalorder %s51, %s65
      %p67 = scmp.eq.s32.totalorder %s20, 0
      %p68 = por %p66, %p67
      %s70 = sadd.s32 %s69, 1
      %p73 = scmp.eq.s32.totalorder %s14, 1
      %p74 = scmp.ne.s32.totalorder %s69, %s71
      %p75 = scmp.eq.s32.totalorder %s14, 0
      %p76 = por %p74, %p75
      %p77 = scmp.ne.s32.totalorder %s69, %s71
      %p78 = scmp.eq.s32.totalorder %s19, 1
      %p79 = por %p77, %p78
      %p80 = scmp.ne.s32.totalorder %s71, %s72
      %p81 = scmp.eq.s32.totalorder %s19, 0
      %p82 = por %p80, %p81
      %p83 = scmp.ne.s32.totalorder %s71, %s72
      %p84 = scmp.eq.s32.totalorder %s20, 1
      %p85 = por %p83, %p84
      %p87 = scmp.ne.s32.totalorder %s72, %s86
      %p88 = scmp.eq.s32.totalorder %s20, 0
      %p89 = por %p87, %p88
      %s91 = sadd.s32 %s90, 1
      %p94 = scmp.eq.s32.totalorder %s14, 1
      %p95 = scmp.ne.s32.totalorder %s90, %s92
      %p96 = scmp.eq.s32.totalorder %s14, 0
      %p97 = por %p95, %p96
      %p98 = scmp.ne.s32.totalorder %s90, %s92
      %p99 = scmp.eq.s32.totalorder %s19, 1
      %p100 = por %p98, %p99
      %p101 = scmp.ne.s32.totalorder %s92, %s93
      %p102 = scmp.eq.s32.totalorder %s19, 0
      %p103 = por %p101, %p102
      %p104 = scmp.ne.s32.totalorder %s92, %s93
      %p105 = scmp.eq.s32.totalorder %s20, 1
      %p106 = por %p104, %p105
      %p108 = scmp.ne.s32.totalorder %s93, %s107
      %p109 = scmp.eq.s32.totalorder %s20, 0
      %p110 = por %p108, %p109
      %s112 = sadd.s32 %s111, 1
      %p115 = scmp.eq.s32.totalorder %s14, 1
      %p116 = scmp.ne.s32.totalorder %s111, %s113
      %p117 = scmp.eq.s32.totalorder %s14, 0
      %p118 = por %p116, %p117
      %p119 = scmp.ne.s32.totalorder %s111, %s113
      %p120 = scmp.eq.s32.totalorder %s19, 1
      %p121 = por %p119, %p120
      %p122 = scmp.ne.s32.totalorder %s113, %s114
      %p123 = scmp.eq.s32.totalorder %s19, 0
      %p124 = por %p122, %p123
      %p125 = scmp.ne.s32.totalorder %s113, %s114
      %p126 = scmp.eq.s32.totalorder %s20, 1
      %p127 = por %p125, %p126
      %p129 = scmp.ne.s32.totalorder %s114, %s128
      %p130 = scmp.eq.s32.totalorder %s20, 0
      %p131 = por %p129, %p130
      %s132 = ssub.s32 %s14, %s21
      %p133 = scmp.eq.s32.totalorder %s132, 0
      %s135 = sadd.s32 %s134, 1
      %s136 = scalar_select %p133, %s134, %s135
      %p139 = pneg %p133
      %p140 = scmp.eq.s32.totalorder %s14, 1
      %p141 = por %p139, %p140
      %p142 = scmp.ne.s32.totalorder %s134, %s137
      %p143 = scmp.eq.s32.totalorder %s14, 0
      %p144 = por %p142, %p143
      %p145 = scmp.ne.s32.totalorder %s134, %s137
      %p146 = scmp.eq.s32.totalorder %s19, 1
      %p147 = por %p145, %p146
      %p148 = scmp.ne.s32.totalorder %s137, %s138
      %p149 = scmp.eq.s32.totalorder %s19, 0
      %p150 = por %p148, %p149
      %p151 = scmp.ne.s32.totalorder %s137, %s138
      %p152 = scmp.eq.s32.totalorder %s20, 1
      %p153 = por %p151, %p152
      %p155 = scmp.ne.s32.totalorder %s138, %s154
      %p156 = scmp.eq.s32.totalorder %s20, 0
      %p157 = por %p155, %p156
      %p158 = scmp.le.s32.totalorder 1, %s14
      %p159 = scmp.lt.s32.totalorder %s14, 3
      %p160 = pnand %p158, %p159
      %p161 = pneg %p160
      // Predicated region
      $region9: #{tpu_custom_call.1} parent=5 // pred_check
        _
      $region10: #{tpu_custom_call.1} parent=5 // pred_check_branch
        %163 = sbr.rel (%p160) target = $region12
      $region11: #{tpu_custom_call.1} parent=5 // pred_region
        %s164 = ssub.s32 %s14, 1
        // Predicated region
        $region13: #{tpu_custom_call.1} parent=11 // pred_check
          %p165 = pneg %p61
        $region14: #{tpu_custom_call.1} parent=11 // pred_check_branch
          %167 = sbr.rel (%p165) target = $region16
        $region15: #{tpu_custom_call.1} parent=11 // pred_region
          _
        $region16: #{tpu_custom_call.1} parent=11 // pred_fallthru
          _
        // Predicated region
        $region17: #{tpu_custom_call.1} parent=11 // pred_check
          %p168 = pneg %p82
        $region18: #{tpu_custom_call.1} parent=11 // pred_check_branch
          %170 = sbr.rel (%p168) target = $region20
        $region19: #{tpu_custom_call.1} parent=11 // pred_region
          _
        $region20: #{tpu_custom_call.1} parent=11 // pred_fallthru
          _
        // Predicated region
        $region21: #{tpu_custom_call.1} parent=11 // pred_check
          %p171 = pneg %p103
        $region22: #{tpu_custom_call.1} parent=11 // pred_check_branch
          %173 = sbr.rel (%p171) target = $region24
        $region23: #{tpu_custom_call.1} parent=11 // pred_region
          _
        $region24: #{tpu_custom_call.1} parent=11 // pred_fallthru
          _
        // Predicated region
        $region25: #{tpu_custom_call.1} parent=11 // pred_check
          %p174 = pneg %p124
        $region26: #{tpu_custom_call.1} parent=11 // pred_check_branch
          %176 = sbr.rel (%p174) target = $region28
        $region27: #{tpu_custom_call.1} parent=11 // pred_region
          _
        $region28: #{tpu_custom_call.1} parent=11 // pred_fallthru
          _
      $region12: #{tpu_custom_call.1} parent=5 // pred_fallthru
        _
      %p177 = scmp.lt.s32.totalorder %s14, 2
      // Predicated region
      $region29: #{tpu_custom_call.1} parent=5 // pred_check
        %p178 = pneg %p177
      $region30: #{tpu_custom_call.1} parent=5 // pred_check_branch
        %180 = sbr.rel (%p178) target = $region32
      $region31: #{tpu_custom_call.1} parent=5 // pred_region
        // Predicated region
        $region33: #{tpu_custom_call.1} parent=31 // pred_check
          %p181 = pneg %p34
        $region34: #{tpu_custom_call.1} parent=31 // pred_check_branch
          %183 = sbr.rel (%p181) target = $region36
        $region35: #{tpu_custom_call.1} parent=31 // pred_region
          %p184 = scmp.lt.s32.totalorder %s14, 1
          %s185 = scalar_select %p184, %s14, 1
          %s186 = smul.addr %s185, 32
          %s187 = smul.addr %s186, 8
          %s188 = scalar_lea.vmem %s0, %s187
        $region36: #{tpu_custom_call.1} parent=31 // pred_fallthru
          _
      $region32: #{tpu_custom_call.1} parent=5 // pred_fallthru
        _
      %p189 = scmp.le.s32.totalorder 1, %s14
      %p190 = scmp.lt.s32.totalorder %s14, 3
      %p191 = pnand %p189, %p190
      %p192 = pneg %p191
      // Predicated region
      $region37: #{tpu_custom_call.1} parent=5 // pred_check
        _
      $region38: #{tpu_custom_call.1} parent=5 // pred_check_branch
        %194 = sbr.rel (%p191) target = $region40
      $region39: #{tpu_custom_call.1} parent=5 // pred_region
        %s195 = ssub.s32 %s14, 1
        %p196 = scmp.lt.s32.totalorder %s19, 1
        %s197 = scalar_select %p196, %s19, 1
        %s198 = smul.addr %s197, 32
        %s199 = smul.addr %s198, 8
        %s200 = scalar_lea.vmem %s0, %s199
        %p201 = pneg %p40
        %p202 = pneg %p37
        %p203 = pneg %p61
        %p204 = pneg %p58
        %p205 = pneg %p82
        %p206 = pneg %p79
        %p207 = pneg %p103
        %p208 = pneg %p100
        %p209 = pneg %p124
        %p210 = pneg %p121
        %p211 = pneg %p150
        %p212 = pneg %p147
        %s213 = sand.u32 %s137, 1
        %s214 = scalar_lea.sflag [#allocation3], %s213
        %s215 = sand.u32 %s137, 1
        %s216 = scalar_lea.vmem [#allocation2], %s215
        %p217 = scmp.lt.s32.totalorder %s19, 1
        %s218 = scalar_select %p217, %s19, 1
        %s219 = smul.addr %s218, 32
        %s220 = smul.addr %s219, 8
        %s221 = scalar_lea.vmem %s0, %s220
        %v222 = vld [vmem:[%s221] sm:$0xff]
        %v223 = vld [vmem:[%s221 + $0x8] sm:$0xff]
        %v224 = vld [vmem:[%s221 + $0x10] sm:$0xff]
        %v225 = vld [vmem:[%s221 + $0x18] sm:$0xff]
        %v226 = vld [vmem:[%s221 + $0x20] sm:$0xff]
        %v227 = vld [vmem:[%s221 + $0x28] sm:$0xff]
        %v228 = vld [vmem:[%s221 + $0x30] sm:$0xff]
        %v229 = vld [vmem:[%s221 + $0x38] sm:$0xff]
        %v230 = vld [vmem:[%s221 + $0x40] sm:$0xff]
        %v231 = vld [vmem:[%s221 + $0x48] sm:$0xff]
        %v232 = vld [vmem:[%s221 + $0x50] sm:$0xff]
        %v233 = vld [vmem:[%s221 + $0x58] sm:$0xff]
        %v234 = vld [vmem:[%s221 + $0x60] sm:$0xff]
        %v235 = vld [vmem:[%s221 + $0x68] sm:$0xff]
        %v236 = vld [vmem:[%s221 + $0x70] sm:$0xff]
        %v237 = vld [vmem:[%s221 + $0x78] sm:$0xff]
        %v238 = vld [vmem:[%s221 + $0x80] sm:$0xff]
        %v239 = vld [vmem:[%s221 + $0x88] sm:$0xff]
        %v240 = vld [vmem:[%s221 + $0x90] sm:$0xff]
        %v241 = vld [vmem:[%s221 + $0x98] sm:$0xff]
        %v242 = vld [vmem:[%s221 + $0xa0] sm:$0xff]
        %v243 = vld [vmem:[%s221 + $0xa8] sm:$0xff]
        %v244 = vld [vmem:[%s221 + $0xb0] sm:$0xff]
        %v245 = vld [vmem:[%s221 + $0xb8] sm:$0xff]
        %v246 = vld [vmem:[%s221 + $0xc0] sm:$0xff]
        %v247 = vld [vmem:[%s221 + $0xc8] sm:$0xff]
        %v248 = vld [vmem:[%s221 + $0xd0] sm:$0xff]
        %v249 = vld [vmem:[%s221 + $0xd8] sm:$0xff]
        %v250 = vld [vmem:[%s221 + $0xe0] sm:$0xff]
        %v251 = vld [vmem:[%s221 + $0xe8] sm:$0xff]
        %v252 = vld [vmem:[%s221 + $0xf0] sm:$0xff]
        %v253 = vld [vmem:[%s221 + $0xf8] sm:$0xff]
        %vm254 = vcmask 261120
        %v255 = vsel %vm254, %v222, 0.0
        %v256 = vsel %vm254, %v223, 0.0
        %v257 = vadd.f32 %v255, %v256
        %v258 = vsel %vm254, %v224, 0.0
        %v259 = vadd.f32 %v257, %v258
        %v260 = vsel %vm254, %v225, 0.0
        %v261 = vadd.f32 %v259, %v260
        %v262 = vsel %vm254, %v226, 0.0
        %v263 = vadd.f32 %v261, %v262
        %v264 = vsel %vm254, %v227, 0.0
        %v265 = vadd.f32 %v263, %v264
        %v266 = vsel %vm254, %v228, 0.0
        %v267 = vadd.f32 %v265, %v266
        %v268 = vsel %vm254, %v229, 0.0
        %v269 = vadd.f32 %v267, %v268
        %v270 = vsel %vm254, %v230, 0.0
        %v271 = vadd.f32 %v269, %v270
        %v272 = vsel %vm254, %v231, 0.0
        %v273 = vadd.f32 %v271, %v272
        %v274 = vsel %vm254, %v232, 0.0
        %v275 = vadd.f32 %v273, %v274
        %v276 = vsel %vm254, %v233, 0.0
        %v277 = vadd.f32 %v275, %v276
        %v278 = vsel %vm254, %v234, 0.0
        %v279 = vadd.f32 %v277, %v278
        %v280 = vsel %vm254, %v235, 0.0
        %v281 = vadd.f32 %v279, %v280
        %v282 = vsel %vm254, %v236, 0.0
        %v283 = vadd.f32 %v281, %v282
        %v284 = vsel %vm254, %v237, 0.0
        %v285 = vadd.f32 %v283, %v284
        %v286 = vsel %vm254, %v238, 0.0
        %v287 = vadd.f32 %v285, %v286
        %v288 = vsel %vm254, %v239, 0.0
        %v289 = vadd.f32 %v287, %v288
        %v290 = vsel %vm254, %v240, 0.0
        %v291 = vadd.f32 %v289, %v290
        %v292 = vsel %vm254, %v241, 0.0
        %v293 = vadd.f32 %v291, %v292
        %v294 = vsel %vm254, %v242, 0.0
        %v295 = vadd.f32 %v293, %v294
        %v296 = vsel %vm254, %v243, 0.0
        %v297 = vadd.f32 %v295, %v296
        %v298 = vsel %vm254, %v244, 0.0
        %v299 = vadd.f32 %v297, %v298
        %v300 = vsel %vm254, %v245, 0.0
        %v301 = vadd.f32 %v299, %v300
        %v302 = vsel %vm254, %v246, 0.0
        %v303 = vadd.f32 %v301, %v302
        %v304 = vsel %vm254, %v247, 0.0
        %v305 = vadd.f32 %v303, %v304
        %v306 = vsel %vm254, %v248, 0.0
        %v307 = vadd.f32 %v305, %v306
        %v308 = vsel %vm254, %v249, 0.0
        %v309 = vadd.f32 %v307, %v308
        %v310 = vsel %vm254, %v250, 0.0
        %v311 = vadd.f32 %v309, %v310
        %v312 = vsel %vm254, %v251, 0.0
        %v313 = vadd.f32 %v311, %v312
        %v314 = vsel %vm254, %v252, 0.0
        %v315 = vadd.f32 %v313, %v314
        %v316 = vsel %vm254, %v253, 0.0
        %v317 = vadd.f32 %v315, %v316
        %v318 = vrot.slane %v317, 4
        %v319 = vadd.f32 %v317, %v318
        %v320 = vrot.slane %v319, 2
        %v321 = vadd.f32 %v319, %v320
        %v322 = vrot.slane %v321, 1
        %v323 = vadd.f32 %v321, %v322
        %v324 = vmul.f32 %v323, 0.00390625
        %v325 = vsel %vm254, %v222, -inf
        %v326 = vsel %vm254, %v223, -inf
        %v327 = vsel %vm254, %v224, -inf
        %v328 = vsel %vm254, %v225, -inf
        %v329 = vsel %vm254, %v226, -inf
        %v330 = vmax.f32 %v325, %v329
        %v331 = vsel %vm254, %v227, -inf
        %v332 = vmax.f32 %v326, %v331
        %v333 = vsel %vm254, %v228, -inf
        %v334 = vmax.f32 %v327, %v333
        %v335 = vsel %vm254, %v229, -inf
        %v336 = vmax.f32 %v328, %v335
        %v337 = vsel %vm254, %v230, -inf
        %v338 = vmax.f32 %v330, %v337
        %v339 = vsel %vm254, %v231, -inf
        %v340 = vmax.f32 %v332, %v339
        %v341 = vsel %vm254, %v232, -inf
        %v342 = vmax.f32 %v334, %v341
        %v343 = vsel %vm254, %v233, -inf
        %v344 = vmax.f32 %v336, %v343
        %v345 = vsel %vm254, %v234, -inf
        %v346 = vmax.f32 %v338, %v345
        %v347 = vsel %vm254, %v235, -inf
        %v348 = vmax.f32 %v340, %v347
        %v349 = vsel %vm254, %v236, -inf
        %v350 = vmax.f32 %v342, %v349
        %v351 = vsel %vm254, %v237, -inf
        %v352 = vmax.f32 %v344, %v351
        %v353 = vsel %vm254, %v238, -inf
        %v354 = vmax.f32 %v346, %v353
        %v355 = vsel %vm254, %v239, -inf
        %v356 = vmax.f32 %v348, %v355
        %v357 = vsel %vm254, %v240, -inf
        %v358 = vmax.f32 %v350, %v357
        %v359 = vsel %vm254, %v241, -inf
        %v360 = vmax.f32 %v352, %v359
        %v361 = vsel %vm254, %v242, -inf
        %v362 = vmax.f32 %v354, %v361
        %v363 = vsel %vm254, %v243, -inf
        %v364 = vmax.f32 %v356, %v363
        %v365 = vsel %vm254, %v244, -inf
        %v366 = vmax.f32 %v358, %v365
        %v367 = vsel %vm254, %v245, -inf
        %v368 = vmax.f32 %v360, %v367
        %v369 = vsel %vm254, %v246, -inf
        %v370 = vmax.f32 %v362, %v369
        %v371 = vsel %vm254, %v247, -inf
        %v372 = vmax.f32 %v364, %v371
        %v373 = vsel %vm254, %v248, -inf
        %v374 = vmax.f32 %v366, %v373
        %v375 = vsel %vm254, %v249, -inf
        %v376 = vmax.f32 %v368, %v375
        %v377 = vsel %vm254, %v250, -inf
        %v378 = vmax.f32 %v370, %v377
        %v379 = vsel %vm254, %v251, -inf
        %v380 = vmax.f32 %v372, %v379
        %v381 = vsel %vm254, %v252, -inf
        %v382 = vmax.f32 %v374, %v381
        %v383 = vsel %vm254, %v253, -inf
        %v384 = vmax.f32 %v376, %v383
        %v385 = vmax.f32 %v378, %v380
        %v386 = vmax.f32 %v382, %v384
        %v387 = vmax.f32 %v385, %v386
        %v388 = vrot.slane %v387, 4
        %v389 = vmax.f32 %v387, %v388
        %v390 = vrot.slane %v389, 2
        %v391 = vmax.f32 %v389, %v390
        %v392 = vrot.slane %v391, 1
        %v393 = vmax.f32 %v391, %v392
        %vm394 = vcmask 1040384
        %v395 = vsel %vm394, %v324, %v393
        %v396 = vld [vmem:[%s1] sm:$0xff]
        %v397 = vld [vmem:[%s1 + $0x8] sm:$0xff]
        %v398 = vld [vmem:[%s1 + $0x10] sm:$0xff]
        %v399 = vld [vmem:[%s1 + $0x18] sm:$0xff]
        %v400 = vld [vmem:[%s2] sm:$0x1]
        %v402 = vperm.slane %v400, 0
        %v405 = vsel %vm254, %v395, 0
        %407 = vmatpush.msra.mxu0 0.0
        %408 = vmatpush.msra.mxu0 0.0
        %409 = vmatpush.msra.mxu0 0.0
        %410 = vmatpush.msra.mxu0 0.0
        %411 = vmatpush.msra.mxu0 0.0
        %412 = vmatpush.msra.mxu0 0.0
        %413 = vmatpush.msra.mxu0 0.0
        %414 = vmatpush.msra.mxu0 0.0
        %415 = vmatpush.msra.mxu0 0.0
        %416 = vmatpush.msra.mxu0 0.0
        %417 = vmatpush.msra.mxu0 0.0
        %418 = vmatpush.msra.mxu0 0.0
        %419 = vmatpush.msra.mxu0 %v399
        %420 = vmatpush.msra.mxu0 %v398
        %421 = vmatpush.msra.mxu0 %v397
        %422 = vmatpush.msra.mxu0 %v396
        %423 = vmatmul.f32.gmra.mxu0 %v405
        %v424 = vpop.f32.mrf.mxu0
        %v425 = vadd.f32 %v402, %v424
        %426 = vdwg.mxu0
        %v427 = vmax.f32 %v425, 0.0
        %v428 = vld [vmem:[%s3] sm:$0x3]
        %v429 = vld [vmem:[%s4] sm:$0x1]
        %v431 = vperm.slane %v429, 0
        %vm433 = vcmask 15360
        %v435 = vsel %vm433, %v427, 0
        %vm437 = vcmask 1041408
        %v439 = vsel %vm437, %v428, 0
        %441 = vmatpush.msra.mxu0 0.0
        %442 = vmatpush.msra.mxu0 0.0
        %443 = vmatpush.msra.mxu0 0.0
        %444 = vmatpush.msra.mxu0 0.0
        %445 = vmatpush.msra.mxu0 0.0
        %446 = vmatpush.msra.mxu0 0.0
        %447 = vmatpush.msra.mxu0 0.0
        %448 = vmatpush.msra.mxu0 0.0
        %449 = vmatpush.msra.mxu0 0.0
        %450 = vmatpush.msra.mxu0 0.0
        %451 = vmatpush.msra.mxu0 0.0
        %452 = vmatpush.msra.mxu0 0.0
        %453 = vmatpush.msra.mxu0 0.0
        %454 = vmatpush.msra.mxu0 0.0
        %455 = vmatpush.msra.mxu0 0.0
        %456 = vmatpush.msra.mxu0 %v439
        %457 = vmatmul.f32.gmra.mxu0 %v435
        %v458 = vpop.f32.mrf.mxu0
        %v459 = vadd.f32 %v431, %v458
        %460 = vdwg.mxu0
        %v462 = vrot.slane %v459, 1
        %v464 = vadd.f32 %v459, %v462
        %v465 = vsub.f32 0.0, %v464
        %v466 = vmul.f32 %v465, 1.442695
        %v467 = vpow.pop %v466
        %v468 = vadd.f32 %v467, 1.0
        %v469 = vrcp.pop %v468
        %v470 = vmul.f32 %v468, %v469
        %v471 = vsub.f32 1.0, %v470
        %v472 = vmul.f32 %v469, %v471
        %v473 = vadd.f32 %v469, %v472
        %vm474 = vweird.f32 %v468
        %vm475 = vweird.f32 %v469
        %vm476 = vmor %vm474, %vm475
        %v477 = vsel %vm476, %v469, %v473
        %v478 = vand.u32 2147483647, %v468
        %vm479 = vcmp.eq.f32.partialorder %v478, 8.507059e+37
        %v480 = vand.u32 %v468, 2147483648
        %v481 = vor.u32 1.1754944e-38, %v480
        %v482 = vsel %vm479, %v481, %v477
        %v483 = vmul.f32 1.0, %v482
        %vm484 = vcmask 253952
        %485 = vst.msk [vmem:[%s216] sm:$0x1] %vm484, %v483
        %s486 = sand.u32 %s137, 1
        %s487 = scalar_lea.sflag [#allocation3], %s486
        %s488 = sand.u32 %s137, 1
        %s489 = scalar_lea.vmem [#allocation2], %s488
        // Predicated region
        $region41: #{tpu_custom_call.1} parent=39 // pred_check
          %p490 = pneg %p147
        $region42: #{tpu_custom_call.1} parent=39 // pred_check_branch
          %492 = sbr.rel (%p490) target = $region44
        $region43: #{tpu_custom_call.1} parent=39 // pred_region
          %494 = vsyncadd %s487, 0
          %s495 = scalar_lea.hbm %s5, %s19
          %s497 = sshll.u32 %s489, 4
          %s498 = int_to_ptr.vmem [resolvable:$true] %s497
          %s499 = sshll.u32 %s495, 4
          %s500 = int_to_ptr.hbm [resolvable:$true] %s499
          %502 = dma.vmem_to_hbm [thread:$0]  %s498, 16, %s500, %s487
        $region44: #{tpu_custom_call.1} parent=39 // pred_fallthru
          _
      $region40: #{tpu_custom_call.1} parent=5 // pred_fallthru
        _
      %p503 = scmp.le.s32.totalorder 2, %s14
      // Predicated region
      $region45: #{tpu_custom_call.1} parent=5 // pred_check
        %p504 = pneg %p503
      $region46: #{tpu_custom_call.1} parent=5 // pred_check_branch
        %506 = sbr.rel (%p504) target = $region48
      $region47: #{tpu_custom_call.1} parent=5 // pred_region
        %s507 = ssub.s32 %s14, 2
        // Predicated region
        $region49: #{tpu_custom_call.1} parent=47 // pred_check
          %p508 = pneg %p153
        $region50: #{tpu_custom_call.1} parent=47 // pred_check_branch
          %510 = sbr.rel (%p508) target = $region52
        $region51: #{tpu_custom_call.1} parent=47 // pred_region
          %s511 = sand.u32 %s138, 1
          %s512 = scalar_lea.sflag [#allocation3], %s511
          %s513 = sand.u32 %s138, 1
          %s514 = scalar_lea.vmem [#allocation2], %s513
          %516 = dma.done %s512, 16
        $region52: #{tpu_custom_call.1} parent=47 // pred_fallthru
          _
      $region48: #{tpu_custom_call.1} parent=5 // pred_fallthru
        _
    $region6: #{tpu_custom_call.1} parent=1 // loop_footer
      %s18 = sadd.s32 1, %s14
    $region7: #{tpu_custom_call.1} parent=1 // loop_footer_branch
      %13 = sbr.rel target = $region3
    $region8: #{tpu_custom_call.1} parent=1 // loop_exit
      _
    %517 = vsyncpa [#allocation3], 1
    %s518 = scalar_lea.sflag [#allocation3], 1
    %519 = vsyncpa %s518, 1

</llo_original>
